<compile_context>
chip_gen: v7x
topology: tpu7x:2x2x1
jax: 0.10.0
libtpu: 0.0.40
codegen_flags: <defaults>
</compile_context>

<pallas_src>
import jax
import jax.numpy as jnp
from jax import lax
from jax.experimental import pallas as pl
from jax.experimental.pallas import tpu as pltpu

_LANES = 128
_ROW_GRAN = 16   # row-block granularity: native bf16 (16,128) tile


def _criterion_kernel(n_ref, x_ref, y_ref, part_ref, pred_ref):
    """One (block, 128) tile of stable BCE-with-logits + sigmoid.

    n_ref    : SMEM (1,) int32     -- true (un-padded) element count N
    x_ref    : VMEM (block, 128)   -- logits tile (f32)
    y_ref    : VMEM (block, 128)   -- labels tile (bf16, {0,1})
    part_ref : VMEM (1, 8, 128)    -- per-block partial loss sum (output)
    pred_ref : VMEM (block, 128)   -- sigmoid(logits) tile (output)
    """
    i = pl.program_id(0)
    block, lanes = x_ref.shape

    x = x_ref[...]
    y = y_ref[...].astype(jnp.float32)   # {0,1}: exact upcast

    # Numerically stable BCE with logits (PyTorch formulation):
    #   l = max(x, 0) - x*y + log(1 + exp(-|x|))
    e = jnp.exp(-jnp.abs(x))             # single EUP exp, reused below
    bce = jnp.maximum(x, 0.0) - x * y + jnp.log1p(e)

    # sigmoid(x) reusing e = exp(-|x|):
    #   x >= 0: 1 / (1 + e)      x < 0: e / (1 + e)
    # TODO(synk): pl.reciprocal(1+e, approx=True) saves a few VALU ops on v7x
    # but perturbs predicts by ~1e-3; keep the exact divide for bit-faithful
    # sigmoid semantics.
    inv = 1.0 / (1.0 + e)
    pred_ref[...] = jnp.where(x >= 0.0, inv, e * inv).astype(pred_ref.dtype)

    def _reduce_to_vreg(t):
        # (block,128) -> (block//8, 8, 128): pure retiling (vregs untouched);
        # sum over axis 0 is an in-register VALU add chain -> one (8,128) vreg.
        return t.reshape(block // 8, 8, lanes).sum(axis=0)

    tile_end = (i + 1) * block * lanes   # int32; fine for B < 2**31 elements

    # Hot path: full tiles accumulate unmasked (no iota/compare/select cost).
    @pl.when(tile_end <= n_ref[0])
    def _full_tile():
        part_ref[0] = _reduce_to_vreg(bce)

    # Cold path: only the tile containing the padded tail pays for the mask.
    @pl.when(tile_end > n_ref[0])
    def _tail_tile():
        row = lax.broadcasted_iota(jnp.int32, bce.shape, 0)
        col = lax.broadcasted_iota(jnp.int32, bce.shape, 1)
        flat = (i * block + row) * lanes + col
        part_ref[0] = _reduce_to_vreg(jnp.where(flat < n_ref[0], bce, 0.0))


def finetune_criterion(logits, labels, *, block_rows=2048):
    """logits: (B, 1) f32 model output; labels: (B,) targets in {0,1}.

    Returns (loss_scalar, predicts) mirroring (loss, logging_output['predicts'])."""
    squeezed = jnp.squeeze(logits, axis=-1).astype(jnp.float32)   # (B,)
    labels_h = labels.astype(jnp.bfloat16)                        # exact for {0,1}
    n = squeezed.shape[0]

    # Lane-dense layout: (rows_padded, 128) with rows_padded % block == 0 and
    # block % 16 == 0 (native bf16 packing for the label tiles).
    rows = pl.cdiv(n, _LANES)
    block = max(_ROW_GRAN,
                (min(block_rows, pl.cdiv(rows, _ROW_GRAN) * _ROW_GRAN)
                 // _ROW_GRAN) * _ROW_GRAN)
    rows_padded = pl.cdiv(rows, block) * block
    total = rows_padded * _LANES
    grid = rows_padded // block

    # TODO(synk): these pad/reshape copies (and the [:n] slice below) are no-ops
    # when the producer already emits (rows, 128) slabs with B % (block*128)==0;
    # long-term, fuse the criterion into the head matmul epilogue instead.
    x2 = jnp.pad(squeezed, (0, total - n)).reshape(rows_padded, _LANES)
    y2 = jnp.pad(labels_h, (0, total - n)).reshape(rows_padded, _LANES)
    n_arr = jnp.array([n], dtype=jnp.int32)

    partials, pred = pl.pallas_call(
        _criterion_kernel,
        out_shape=(
            jax.ShapeDtypeStruct((grid, 8, _LANES), jnp.float32),      # per-block sums
            jax.ShapeDtypeStruct((rows_padded, _LANES), jnp.float32),  # sigmoid slab
        ),
        grid_spec=pltpu.PrefetchScalarGridSpec(
            num_scalar_prefetch=1,
            grid=(grid,),
            in_specs=[
                pl.BlockSpec((block, _LANES), lambda i, n_ref: (i, 0)),
                pl.BlockSpec((block, _LANES), lambda i, n_ref: (i, 0)),
            ],
            out_specs=(
                pl.BlockSpec((1, 8, _LANES), lambda i, n_ref: (i, 0, 0)),
                pl.BlockSpec((block, _LANES), lambda i, n_ref: (i, 0)),
            ),
        ),
        compiler_params=pltpu.CompilerParams(
            # Per-block partial sums -> no cross-iteration state, so the row
            # axis is truly parallel (lets v7x shard the grid across both TCs).
            dimension_semantics=("parallel",),
        ),
    )(n_arr, x2, y2)

    # Tiny XLA reduction over (grid, 8, 128) finishes the mean by the TRUE N.
    loss = jnp.sum(partials) / jnp.float32(n)
    return loss, pred.reshape(-1)[:n]


# ---------------------------------------------------------------------------
# Deterministic toy "model.forward(inputs, pad_mask)" (plain-JAX glue):
# masked mean-pool over the sequence, then a linear head -> (B, 1) logits.
# ---------------------------------------------------------------------------
def toy_model_forward(inputs, pad_mask, w, b):
    # inputs: (B, T, F), pad_mask: (B, T) with 1 = valid frame
    mask = pad_mask[..., None].astype(inputs.dtype)                            # (B, T, 1)
    pooled = (inputs * mask).sum(axis=1) / jnp.maximum(mask.sum(axis=1), 1.0)  # (B, F)
    return pooled @ w + b                                                      # (B, 1)


def _reference(logits, labels):
    x = jnp.squeeze(logits, -1).astype(jnp.float32)
    y = labels.astype(jnp.float32)
    bce = jnp.mean(jnp.maximum(x, 0.0) - x * y + jnp.log1p(jnp.exp(-jnp.abs(x))))
    return bce, jax.nn.sigmoid(x)


if __name__ == "__main__":
    key = jax.random.PRNGKey(0)
    k_in, k_mask, k_lab, k_w, k_b2, k_b2l, k_b3, k_b3l = jax.random.split(key, 8)

    # --- Test 1: small shapes through the toy model (B=8, T=16, F=32) -------
    B, T, F = 8, 16, 32
    inputs = jax.random.normal(k_in, (B, T, F), dtype=jnp.float32)
    valid_lens = 4 + (jnp.arange(B) % (T - 4))
    pad_mask = (jnp.arange(T)[None, :] < valid_lens[:, None]).astype(jnp.float32)
    labels = jax.random.bernoulli(k_lab, 0.5, (B,)).astype(jnp.float32)
    w = jax.random.normal(k_w, (F, 1), dtype=jnp.float32) * 0.1
    b = jnp.zeros((1,), dtype=jnp.float32)

    logits = toy_model_forward(inputs, pad_mask, w, b)                 # (B, 1)
    loss, predicts = finetune_criterion(logits, labels)
    jax.block_until_ready((loss, predicts))

    loss_ref, pred_ref = _reference(logits, labels)
    assert jnp.allclose(loss, loss_ref, atol=1e-5, rtol=1e-5)
    assert jnp.allclose(predicts, pred_ref, atol=1e-5, rtol=1e-5)

    # --- Test 2: multi-step grid, full tiles AND a masked tail tile ---------
    B2 = 5000                                  # rows=40 -> grid of 3 at block=16
    logits2 = jax.random.normal(k_b2, (B2, 1), dtype=jnp.float32) * 2.0
    labels2 = jax.random.bernoulli(k_b2l, 0.5, (B2,)).astype(jnp.float32)
    loss2, pred2 = finetune_criterion(logits2, labels2, block_rows=16)
    jax.block_until_ready((loss2, pred2))

    loss2_ref, pred2_ref = _reference(logits2, labels2)
    assert jnp.allclose(loss2, loss2_ref, atol=1e-5, rtol=1e-5)
    assert jnp.allclose(pred2, pred2_ref, atol=1e-5, rtol=1e-5)

    # --- Test 3: exactly tile-aligned B (no padding, unmasked hot path) -----
    B3 = 4096                                  # rows=32 -> grid of 2 at block=16
    logits3 = jax.random.normal(k_b3, (B3, 1), dtype=jnp.float32)
    labels3 = jax.random.bernoulli(k_b3l, 0.5, (B3,)).astype(jnp.float32)
    loss3, pred3 = finetune_criterion(logits3, labels3, block_rows=16)
    jax.block_until_ready((loss3, pred3))

    loss3_ref, pred3_ref = _reference(logits3, labels3)
    assert jnp.allclose(loss3, loss3_ref, atol=1e-5, rtol=1e-5)
    assert jnp.allclose(pred3, pred3_ref, atol=1e-5, rtol=1e-5)

    # TODO(synk): logging_output 'images' dict (raw wav passthrough), loss.item()
    # and the .detach().cpu().numpy() transfer are host-side bookkeeping with no
    # kernel equivalent; they are omitted.
    print("KERNEL_OK")
</pallas_src>

<mosaic_0001>
module attributes {stable_mosaic.version = 11 : i64} {
  func.func @_criterion_kernel(%arg0: i32, %arg1: memref<1xi32, #tpu.memory_space<smem>>, %arg2: memref<16x128xf32, #tpu.memory_space<vmem>>, %arg3: memref<16x128xbf16, #tpu.memory_space<vmem>>, %arg4: memref<1x8x128xf32, #tpu.memory_space<vmem>>, %arg5: memref<16x128xf32, #tpu.memory_space<vmem>>) attributes {dimension_semantics = [#tpu.dimension_semantics<parallel>], iteration_bounds = array<i64: 1>, scalar_prefetch = 1 : i64, scratch_operands = 0 : i64, tpu.core_type = #tpu.core_type<tc>, window_params = [{transform_indices = @transform_0, window_bounds = array<i64: 16, 128>}, {transform_indices = @transform_1, window_bounds = array<i64: 16, 128>}, {transform_indices = @transform_2, window_bounds = array<i64: 1, 8, 128>}, {transform_indices = @transform_3, window_bounds = array<i64: 16, 128>}]} {
    %c0 = arith.constant 0 : index
    %c0_0 = arith.constant 0 : index
    %0 = vector.load %arg2[%c0, %c0_0] : memref<16x128xf32, #tpu.memory_space<vmem>>, vector<16x128xf32>
    %c0_1 = arith.constant 0 : index
    %c0_2 = arith.constant 0 : index
    %1 = vector.load %arg3[%c0_1, %c0_2] : memref<16x128xbf16, #tpu.memory_space<vmem>>, vector<16x128xbf16>
    %2 = arith.extf %1 : vector<16x128xbf16> to vector<16x128xf32>
    %3 = math.absf %0 : vector<16x128xf32>
    %cst = arith.constant 0.000000e+00 : f32
    %4 = vector.broadcast %cst : f32 to vector<16x128xf32>
    %5 = arith.subf %4, %3 : vector<16x128xf32>
    %6 = math.exp %5 : vector<16x128xf32>
    %cst_3 = arith.constant 0.000000e+00 : f32
    %7 = vector.broadcast %cst_3 : f32 to vector<16x128xf32>
    %8 = arith.maximumf %0, %7 : vector<16x128xf32>
    %9 = arith.mulf %0, %2 : vector<16x128xf32>
    %10 = arith.subf %8, %9 : vector<16x128xf32>
    %11 = math.log1p %6 : vector<16x128xf32>
    %12 = arith.addf %10, %11 : vector<16x128xf32>
    %cst_4 = arith.constant 1.000000e+00 : f32
    %13 = vector.broadcast %cst_4 : f32 to vector<16x128xf32>
    %14 = arith.addf %13, %6 : vector<16x128xf32>
    %cst_5 = arith.constant 1.000000e+00 : f32
    %15 = vector.broadcast %cst_5 : f32 to vector<16x128xf32>
    %16 = arith.divf %15, %14 : vector<16x128xf32>
    %cst_6 = arith.constant 0.000000e+00 : f32
    %17 = vector.broadcast %cst_6 : f32 to vector<16x128xf32>
    %18 = arith.cmpf oge, %0, %17 : vector<16x128xf32>
    %19 = arith.mulf %6, %16 : vector<16x128xf32>
    %20 = arith.select %18, %16, %19 : vector<16x128xi1>, vector<16x128xf32>
    %c0_7 = arith.constant 0 : index
    %c0_8 = arith.constant 0 : index
    %21 = vector.load %arg5[%c0_7, %c0_8] : memref<16x128xf32, #tpu.memory_space<vmem>>, vector<16x128xf32>
    tpu.vector_store %arg5[%c0_7, %c0_8], %20 {strides = array<i32>} : memref<16x128xf32, #tpu.memory_space<vmem>>, vector<16x128xf32>,
    %c1_i32 = arith.constant 1 : i32
    %22 = arith.addi %arg0, %c1_i32 : i32
    %c16_i32 = arith.constant 16 : i32
    %23 = arith.muli %22, %c16_i32 : i32
    %c128_i32 = arith.constant 128 : i32
    %24 = arith.muli %23, %c128_i32 : i32
    %c0_9 = arith.constant 0 : index
    %25 = memref.load %arg1[%c0_9] : memref<1xi32, #tpu.memory_space<smem>>
    %26 = arith.cmpi sle, %24, %25 : i32
    %27 = arith.extui %26 : i1 to i32
    %c0_i32 = arith.constant 0 : i32
    %28 = arith.cmpi ne, %27, %c0_i32 : i32
    scf.if %28 {
      %33 = vector.shape_cast %12 : vector<16x128xf32> to vector<2x8x128xf32>
      %cst_12 = arith.constant dense<0.000000e+00> : vector<8x128xf32>
      %34 = vector.multi_reduction <add>, %33, %cst_12 [0] : vector<2x8x128xf32> to vector<8x128xf32>
      %c0_13 = arith.constant 0 : index
      %c0_14 = arith.constant 0 : index
      %c0_15 = arith.constant 0 : index
      %35 = vector.load %arg4[%c0_13, %c0_14, %c0_15] : memref<1x8x128xf32, #tpu.memory_space<vmem>>, vector<1x8x128xf32>
      %36 = vector.shape_cast %35 : vector<1x8x128xf32> to vector<8x128xf32>
      %37 = vector.shape_cast %34 : vector<8x128xf32> to vector<1x8x128xf32>
      tpu.vector_store %arg4[%c0_13, %c0_14, %c0_15], %37 {strides = array<i32>} : memref<1x8x128xf32, #tpu.memory_space<vmem>>, vector<1x8x128xf32>,
    } else {
    }
    %c0_10 = arith.constant 0 : index
    %29 = memref.load %arg1[%c0_10] : memref<1xi32, #tpu.memory_space<smem>>
    %30 = arith.cmpi sgt, %24, %29 : i32
    %31 = arith.extui %30 : i1 to i32
    %c0_i32_11 = arith.constant 0 : i32
    %32 = arith.cmpi ne, %31, %c0_i32_11 : i32
    scf.if %32 {
      %33 = tpu.iota {dimensions = array<i32: 0>} : vector<16x128xi32>
      %34 = tpu.iota {dimensions = array<i32: 1>} : vector<16x128xi32>
      %c16_i32_12 = arith.constant 16 : i32
      %35 = arith.muli %arg0, %c16_i32_12 : i32
      %36 = vector.broadcast %35 : i32 to vector<16x128xi32>
      %37 = arith.addi %36, %33 : vector<16x128xi32>
      %c128_i32_13 = arith.constant 128 : i32
      %38 = vector.broadcast %c128_i32_13 : i32 to vector<16x128xi32>
      %39 = arith.muli %37, %38 : vector<16x128xi32>
      %40 = arith.addi %39, %34 : vector<16x128xi32>
      %c0_14 = arith.constant 0 : index
      %41 = memref.load %arg1[%c0_14] : memref<1xi32, #tpu.memory_space<smem>>
      %42 = vector.broadcast %41 : i32 to vector<16x128xi32>
      %43 = arith.cmpi slt, %40, %42 : vector<16x128xi32>
      %cst_15 = arith.constant 0.000000e+00 : f32
      %44 = vector.broadcast %cst_15 : f32 to vector<16x128xf32>
      %45 = arith.select %43, %12, %44 : vector<16x128xi1>, vector<16x128xf32>
      %46 = vector.shape_cast %45 : vector<16x128xf32> to vector<2x8x128xf32>
      %cst_16 = arith.constant dense<0.000000e+00> : vector<8x128xf32>
      %47 = vector.multi_reduction <add>, %46, %cst_16 [0] : vector<2x8x128xf32> to vector<8x128xf32>
      %c0_17 = arith.constant 0 : index
      %c0_18 = arith.constant 0 : index
      %c0_19 = arith.constant 0 : index
      %48 = vector.load %arg4[%c0_17, %c0_18, %c0_19] : memref<1x8x128xf32, #tpu.memory_space<vmem>>, vector<1x8x128xf32>
      %49 = vector.shape_cast %48 : vector<1x8x128xf32> to vector<8x128xf32>
      %50 = vector.shape_cast %47 : vector<8x128xf32> to vector<1x8x128xf32>
      tpu.vector_store %arg4[%c0_17, %c0_18, %c0_19], %50 {strides = array<i32>} : memref<1x8x128xf32, #tpu.memory_space<vmem>>, vector<1x8x128xf32>,
    } else {
    }
    return
  }
  func.func @transform_0(%arg0: i32, %arg1: memref<1xi32, #tpu.memory_space<smem>>) -> (i32, i32) {
    %c0_i32 = arith.constant 0 : i32
    %c0_i32_0 = arith.constant 0 : i32
    return %arg0, %c0_i32 : i32, i32
  }
  func.func @transform_1(%arg0: i32, %arg1: memref<1xi32, #tpu.memory_space<smem>>) -> (i32, i32) {
    %c0_i32 = arith.constant 0 : i32
    %c0_i32_0 = arith.constant 0 : i32
    return %arg0, %c0_i32 : i32, i32
  }
  func.func @transform_2(%arg0: i32, %arg1: memref<1xi32, #tpu.memory_space<smem>>) -> (i32, i32, i32) {
    %c0_i32 = arith.constant 0 : i32
    %c0_i32_0 = arith.constant 0 : i32
    %c0_i32_1 = arith.constant 0 : i32
    return %arg0, %c0_i32, %c0_i32_0 : i32, i32, i32
  }
  func.func @transform_3(%arg0: i32, %arg1: memref<1xi32, #tpu.memory_space<smem>>) -> (i32, i32) {
    %c0_i32 = arith.constant 0 : i32
    %c0_i32_0 = arith.constant 0 : i32
    return %arg0, %c0_i32 : i32, i32
  }
}

</mosaic_0001>

<llo_original>
// kernel: tpu_custom_call.1
$region0: #{tpu_custom_call.1}
  #allocation0 [shape = 'u32[]', space=smem, size = 0x4, offset = 0x4, fixed_abs, tag = 'smem constant byte address 0x4 - core index']
  #allocation1 [shape = 'u32[144,128]{1,0:T(1,128)}', space=vmem, size = 0x12000, scoped, tag = 'internal scratch']
  #allocation2 [shape = 's32[1]{0}', space=sflag, size = 0x4, scoped, tag = 'scoped memory for tpu_custom_call.1']
  #allocation3 [shape = 's32[1]{0:T(128)S(6)}', space=smem, size = 0x200, scoped, tag = 'prefetched SMEM operand 0']
  %s0 = inlined_call_operand.<no memory space> [shape: s32[1], index: 0, kind: input, shape index: {}]
  %s1 = inlined_call_operand.hbm [shape: f32[16,128], index: 1, kind: input, shape index: {}]
  %s2 = inlined_call_operand.hbm [shape: bf16[16,128], index: 2, kind: input, shape index: {}]
  %s3 = inlined_call_operand.hbm [shape: f32[1,8,128], index: 3, kind: output, shape index: {0}]
  %s4 = inlined_call_operand.hbm [shape: f32[16,128], index: 4, kind: output, shape index: {1}]
  %5 = xla_tuple %s3, %s4
  %s6 = sld [smem:[#allocation0]]
  $region42: #{tpu_custom_call.1} parent=0
    _
  %s8 = ssub.s32 1, %s6
  %s9 = scalar_select 0, %s8, %s6
  %10 = sst [smem:[#allocation3]] %s0
  $region1: #{tpu_custom_call.1} parent=0
    #allocation4 [shape = 'u8[8192]{0}', space=vmem, size = 0x2000, scoped, tag = 'input window, operand 1, single buffered']
    #allocation5 [shape = 's32[1]{0}', space=sflag, size = 0x4, scoped, tag = 'scoped memory for tpu_custom_call.1']
    #allocation6 [shape = 's32[1]{0}', space=sflag, size = 0x4, scoped, tag = 'scoped memory for tpu_custom_call.1']
    #allocation7 [shape = 'u8[4096]{0}', space=vmem, size = 0x1000, scoped, tag = 'input window, operand 2, single buffered']
    #allocation8 [shape = 's32[1]{0}', space=sflag, size = 0x4, scoped, tag = 'scoped memory for tpu_custom_call.1']
    #allocation9 [shape = 'u8[4096]{0}', space=vmem, size = 0x1000, scoped, tag = 'output window, operand 0, single buffered']
    #allocation10 [shape = 'u8[8192]{0}', space=vmem, size = 0x2000, scoped, tag = 'output window, operand 1, single buffered']
    #allocation11 [shape = 's32[1]{0}', space=sflag, size = 0x4, scoped, tag = 'scoped memory for tpu_custom_call.1']
    %11 = vsyncpa [#allocation5], 0
    %12 = vsyncpa [#allocation8], 0
    %13 = vsyncpa [#allocation6], 0
    %14 = vsyncpa [#allocation11], 0
    // Predicated region
    $region2: #{tpu_custom_call.1} parent=1 // pred_check
      _
    $region3: #{tpu_custom_call.1} parent=1 // pred_check_branch
      %16 = sbr.rel (0) target = $region5
    $region4: #{tpu_custom_call.1} parent=1 // pred_region
      %s18 = ssub.s32 256, 256
      %19 = vsyncadd [#allocation5], %s18
      %s20 = sshll.u32 [#allocation4], 4
      %s21 = int_to_ptr.vmem [resolvable:$true] %s20
      %26 = dma.hbm_to_vmem [thread:$0]  %s1, 256, %s21, [#allocation5], 128, 128, 8
    $region5: #{tpu_custom_call.1} parent=1 // pred_fallthru
      _
    // Predicated region
    $region6: #{tpu_custom_call.1} parent=1 // pred_check
      _
    $region7: #{tpu_custom_call.1} parent=1 // pred_check_branch
      %28 = sbr.rel (0) target = $region9
    $region8: #{tpu_custom_call.1} parent=1 // pred_region
      %s30 = ssub.s32 128, 128
      %31 = vsyncadd [#allocation8], %s30
      %s32 = sshll.u32 [#allocation7], 4
      %s33 = int_to_ptr.vmem [resolvable:$true] %s32
      %38 = dma.hbm_to_vmem [thread:$0]  %s2, 128, %s33, [#allocation8], 64, 64, 4
    $region9: #{tpu_custom_call.1} parent=1 // pred_fallthru
      _
    // Predicated region
    $region10: #{tpu_custom_call.1} parent=1 // pred_check
      _
    $region11: #{tpu_custom_call.1} parent=1 // pred_check_branch
      %40 = sbr.rel (0) target = $region13
    $region12: #{tpu_custom_call.1} parent=1 // pred_region
      %41 = dma.done [#allocation5], 256
    $region13: #{tpu_custom_call.1} parent=1 // pred_fallthru
      _
    // Predicated region
    $region14: #{tpu_custom_call.1} parent=1 // pred_check
      _
    $region15: #{tpu_custom_call.1} parent=1 // pred_check_branch
      %43 = sbr.rel (0) target = $region17
    $region16: #{tpu_custom_call.1} parent=1 // pred_region
      %44 = dma.done [#allocation8], 128
    $region17: #{tpu_custom_call.1} parent=1 // pred_fallthru
      _
    %v45 = vld [vmem:[#allocation4] sm:$0xff]
    %v46 = vld [vmem:[#allocation4 + $0x8] sm:$0xff]
    %v47 = vld [vmem:[#allocation7] sm:$0xf]
    %v48 = vld [vmem:[#allocation7 + $0x4] sm:$0xf]
    %v49 = vunpack.c.l.bf16 %v47
    %v50 = vunpack.c.l.bf16 %v48
    %v51 = vand.u32 2147483647, %v45
    %v52 = vand.u32 2147483647, %v46
    %v53 = vsub.f32 0.0, %v51
    %v54 = vsub.f32 0.0, %v52
    %v55 = vmul.f32 %v53, 1.442695
    %v56 = vpow.pop %v55
    %v57 = vmul.f32 %v54, 1.442695
    %v58 = vpow.pop %v57
    %v59 = vmax.f32 %v45, 0.0
    %v60 = vmax.f32 %v46, 0.0
    %v61 = vmul.f32 %v45, %v49
    %v62 = vmul.f32 %v46, %v50
    %v63 = vsub.f32 %v59, %v61
    %v64 = vsub.f32 %v60, %v62
    %v65 = vadd.f32 %v56, 1.0
    %v66 = vlog2.pop %v65
    %v67 = vmul.f32 %v66, 0.6931472
    %v68 = vmul.f32 -0.5, %v56
    %v69 = vadd.f32 %v68, 1.0
    %v70 = vmul.f32 %v69, %v56
    %v71 = vand.u32 2147483647, %v56
    %vm72 = vcmp.lt.f32.partialorder %v71, 0.0004427343
    %v73 = vsel %vm72, %v70, %v67
    %v74 = vadd.f32 %v58, 1.0
    %v75 = vlog2.pop %v74
    %v76 = vmul.f32 %v75, 0.6931472
    %v77 = vmul.f32 -0.5, %v58
    %v78 = vadd.f32 %v77, 1.0
    %v79 = vmul.f32 %v78, %v58
    %v80 = vand.u32 2147483647, %v58
    %vm81 = vcmp.lt.f32.partialorder %v80, 0.0004427343
    %v82 = vsel %vm81, %v79, %v76
    %v83 = vadd.f32 %v63, %v73
    %v84 = vadd.f32 %v64, %v82
    %v85 = vadd.f32 %v56, 1.0
    %v86 = vadd.f32 %v58, 1.0
    %v87 = vrcp.pop %v85
    %v88 = vmul.f32 1.0, %v87
    %v89 = vrcp.pop %v86
    %v90 = vmul.f32 1.0, %v89
    %vm91 = vcmp.ge.f32.partialorder %v45, 0.0
    %vm92 = vcmp.ge.f32.partialorder %v46, 0.0
    %v93 = vmul.f32 %v56, %v88
    %v94 = vmul.f32 %v58, %v90
    %v95 = vsel %vm91, %v88, %v93
    %v96 = vsel %vm92, %v90, %v94
    %97 = vst [vmem:[#allocation10] sm:$0xff] %v95
    %98 = vst [vmem:[#allocation10 + $0x8] sm:$0xff] %v96
    %s99 = sadd.s32 0, 1
    %s100 = smul.u32 %s99, 2048
    %s101 = sld [smem:[#allocation3]]
    %p102 = scmp.le.s32.totalorder %s100, %s101
    // Predicated region
    $region18: #{tpu_custom_call.1} parent=1 // pred_check
      %p103 = pneg %p102
    $region19: #{tpu_custom_call.1} parent=1 // pred_check_branch
      %105 = sbr.rel (%p103) target = $region21
    $region20: #{tpu_custom_call.1} parent=1 // pred_region
      %v106 = vadd.f32 %v83, %v84
      %107 = vst [vmem:[#allocation9] sm:$0xff] %v106
    $region21: #{tpu_custom_call.1} parent=1 // pred_fallthru
      _
    %s108 = sld [smem:[#allocation3]]
    %p109 = scmp.gt.s32.totalorder %s100, %s108
    // Predicated region
    $region22: #{tpu_custom_call.1} parent=1 // pred_check
      %p110 = pneg %p109
    $region23: #{tpu_custom_call.1} parent=1 // pred_check_branch
      %112 = sbr.rel (%p110) target = $region25
    $region24: #{tpu_custom_call.1} parent=1 // pred_region
      %v113 = vlaneseq
      %v114 = vshrl.u32 %v113, 7
      %v115 = vadd.s32 %v114, 8
      %v116 = vlaneseq
      %v117 = vand.u32 %v116, 127
      %s118 = smul.u32 0, 16
      %v119 = vstv %s118
      %v120 = vadd.s32 %v119, %v114
      %v121 = vadd.s32 %v119, %v115
      %v122 = vmul.u32 %v120, 128
      %v123 = vmul.u32 %v121, 128
      %v124 = vadd.s32 %v122, %v117
      %v125 = vadd.s32 %v123, %v117
      %s126 = sld [smem:[#allocation3]]
      %v127 = vstv %s126
      %vm128 = vcmp.lt.s32.totalorder %v124, %v127
      %vm129 = vcmp.lt.s32.totalorder %v125, %v127
      %v130 = vsel %vm128, %v83, 0.0
      %v131 = vsel %vm129, %v84, 0.0
      %v132 = vadd.f32 %v130, %v131
      %133 = vst [vmem:[#allocation9] sm:$0xff] %v132
    $region25: #{tpu_custom_call.1} parent=1 // pred_fallthru
      _
    // Predicated region
    $region26: #{tpu_custom_call.1} parent=1 // pred_check
      _
    $region27: #{tpu_custom_call.1} parent=1 // pred_check_branch
      %135 = sbr.rel (0) target = $region29
    $region28: #{tpu_custom_call.1} parent=1 // pred_region
      %s137 = ssub.s32 128, 128
      %138 = vsyncadd [#allocation6], %s137
      %s140 = sshll.u32 [#allocation9], 4
      %s141 = int_to_ptr.vmem [resolvable:$true] %s140
      %143 = dma.vmem_to_hbm [thread:$0]  %s141, 128, %s3, [#allocation6]
    $region29: #{tpu_custom_call.1} parent=1 // pred_fallthru
      _
    // Predicated region
    $region30: #{tpu_custom_call.1} parent=1 // pred_check
      _
    $region31: #{tpu_custom_call.1} parent=1 // pred_check_branch
      %145 = sbr.rel (0) target = $region33
    $region32: #{tpu_custom_call.1} parent=1 // pred_region
      %s147 = ssub.s32 256, 256
      %148 = vsyncadd [#allocation11], %s147
      %s149 = sshll.u32 [#allocation10], 4
      %s150 = int_to_ptr.vmem [resolvable:$true] %s149
      %155 = dma.vmem_to_hbm [thread:$0]  %s150, 256, %s4, [#allocation11], 128, 128, 8
    $region33: #{tpu_custom_call.1} parent=1 // pred_fallthru
      _
    // Predicated region
    $region34: #{tpu_custom_call.1} parent=1 // pred_check
      _
    $region35: #{tpu_custom_call.1} parent=1 // pred_check_branch
      %157 = sbr.rel (0) target = $region37
    $region36: #{tpu_custom_call.1} parent=1 // pred_region
      %158 = dma.done [#allocation6], 128
    $region37: #{tpu_custom_call.1} parent=1 // pred_fallthru
      _
    // Predicated region
    $region38: #{tpu_custom_call.1} parent=1 // pred_check
      _
    $region39: #{tpu_custom_call.1} parent=1 // pred_check_branch
      %160 = sbr.rel (0) target = $region41
    $region40: #{tpu_custom_call.1} parent=1 // pred_region
      %161 = dma.done [#allocation11], 256
    $region41: #{tpu_custom_call.1} parent=1 // pred_fallthru
      _
    %162 = vsyncpa [#allocation5], 1
    %163 = vsyncpa [#allocation8], 1
    %164 = vsyncpa [#allocation6], 1
    %165 = vsyncpa [#allocation11], 1

</llo_original>
